<compile_context>
chip_gen: v6e
topology: v6e:2x2x1
jax: 0.10.0
libtpu: 0.0.40
codegen_flags: <defaults>
</compile_context>

<pallas_src>
import jax
import jax.numpy as jnp
from jax.experimental import pallas as pl
from jax.experimental.pallas import tpu as pltpu

HIDDEN = 128   # hidden width of fc1/fc2
LANE = 128     # lane-padded output width of fc3


def _round_up(n, m):
    return ((n + m - 1) // m) * m


def _dqn_kernel(x_ref, w1_ref, w23_ref, b_ref, o_ref):
    # MXU operands in bf16; accumulate / bias-add / ReLU in f32; cast to bf16 at store.
    x = x_ref[...].astype(jnp.bfloat16)
    h1 = jnp.dot(x, w1_ref[...], preferred_element_type=jnp.float32)
    h1 = jnp.maximum(h1 + b_ref[0:1, :], 0.0)
    h2 = jnp.dot(h1.astype(jnp.bfloat16), w23_ref[0],
                 preferred_element_type=jnp.float32)
    h2 = jnp.maximum(h2 + b_ref[1:2, :], 0.0)
    out = jnp.dot(h2.astype(jnp.bfloat16), w23_ref[1],
                  preferred_element_type=jnp.float32)
    o_ref[...] = (out + b_ref[2:3, :]).astype(o_ref.dtype)


def pack_params(params):
    """One-time offline packing: bf16 weights, lane-padded fc3, fused bias slab."""
    w1 = params["w1"].astype(jnp.bfloat16)                       # (in, 128)
    w2, w3 = params["w2"], params["w3"]                          # (128,128), (128,out)
    b1, b2, b3 = params["b1"], params["b2"], params["b3"]        # (1,128),(1,128),(1,out)
    out_dim = w3.shape[1]
    # Lane-dense zero padding of the final layer to a full 128-lane output; the sliced
    # result is bit-identical to the unpadded math.
    w3p = jnp.zeros((HIDDEN, LANE), jnp.float32).at[:, :out_dim].set(w3)
    b3p = jnp.zeros((1, LANE), jnp.float32).at[:, :out_dim].set(b3)
    w23 = jnp.stack([w2, w3p], axis=0).astype(jnp.bfloat16)      # (2, 128, 128)
    b_pack = jnp.concatenate([b1, b2, b3p], axis=0).astype(jnp.float32)  # (3, 128)
    return {"w1": w1, "w23": w23, "b": b_pack, "out_dim": out_dim}


def _min_batch_tiles():
    """>=2 batch tiles on 2-TensorCore chips (v7x) so the parallel axis uses both TCs."""
    try:
        kind = (jax.devices()[0].device_kind or "").lower()
    except Exception:
        return 1
    return 2 if "v7" in kind else 1


def dqn_scheduler_forward(x, packed, *, tm_max=1024):
    """Fused forward pass. x: (B, input_dim) float32; packed: output of pack_params.

    Returns (B, out_dim) bfloat16 Q-values."""
    w1, w23, b_pack = packed["w1"], packed["w23"], packed["b"]
    out_dim = packed["out_dim"]
    B, input_dim = x.shape
    assert w1.shape[0] == input_dim

    # Padding-aware tile selection: pick number of tiles first, then balance the tile
    # size (multiple of 16 for bf16 (16,128) output tiling) to minimize row padding.
    n_tiles = max(pl.cdiv(B, tm_max), _min_batch_tiles())
    tm = _round_up(pl.cdiv(B, n_tiles), 16)
    n_tiles = pl.cdiv(B, tm)
    b_pad = n_tiles * tm
    if b_pad != B:
        # allow_input_fusion on this operand lets XLA fuse the pad into the kernel's
        # operand instead of materializing a padded copy of x in HBM.
        x = jnp.pad(x, ((0, b_pad - B), (0, 0)))

    flops = 2 * b_pad * (input_dim * HIDDEN + HIDDEN * HIDDEN + HIDDEN * LANE)
    bytes_accessed = (x.size * x.dtype.itemsize        # f32 activations in
                      + w1.size * 2 + w23.size * 2     # bf16 weights (one resident pass)
                      + b_pack.size * 4                # f32 biases
                      + b_pad * LANE * 2)              # bf16 output writeback

    out_padded = pl.pallas_call(
        _dqn_kernel,
        out_shape=jax.ShapeDtypeStruct((b_pad, LANE), jnp.bfloat16),
        grid_spec=pltpu.PrefetchScalarGridSpec(
            num_scalar_prefetch=0,
            grid=(n_tiles,),
            in_specs=[
                pl.BlockSpec((tm, input_dim), lambda i: (i, 0)),       # x: tiles over grid
                pl.BlockSpec((input_dim, HIDDEN), lambda i: (0, 0)),   # w1: VMEM-resident
                pl.BlockSpec((2, HIDDEN, LANE), lambda i: (0, 0, 0)),  # w2|w3 slab: resident
                pl.BlockSpec((3, LANE), lambda i: (0, 0)),             # biases: resident
            ],
            out_specs=pl.BlockSpec((tm, LANE), lambda i: (i, 0)),
        ),
        compiler_params=pltpu.CompilerParams(
            dimension_semantics=("parallel",),
            allow_input_fusion=[True, False, False, False],
        ),
        cost_estimate=pl.CostEstimate(
            flops=flops, transcendentals=0, bytes_accessed=bytes_accessed),
    )(x, w1, w23, b_pack)

    # TODO(synk): in a production decision loop keep the lane-dense (b_pad, 128) bf16
    # slab end-to-end (pad b3 with a large negative so a 128-lane argmax is still
    # correct) and skip this slice; kept here so the return shape matches the module.
    return out_padded[:B, :out_dim]


def init_params(key, input_dim, output_dim, hidden=HIDDEN):
    """Deterministic init mimicking nn.Linear default (uniform +/- 1/sqrt(fan_in)).

    Weights stored transposed vs PyTorch as (in, out) so each layer is x @ W + b."""
    ks = jax.random.split(key, 6)

    def lin(kw, kb, fan_in, fan_out):
        bound = 1.0 / jnp.sqrt(jnp.float32(fan_in))
        w = jax.random.uniform(kw, (fan_in, fan_out), jnp.float32, -bound, bound)
        b = jax.random.uniform(kb, (1, fan_out), jnp.float32, -bound, bound)
        return w, b

    w1, b1 = lin(ks[0], ks[1], input_dim, hidden)
    w2, b2 = lin(ks[2], ks[3], hidden, hidden)
    w3, b3 = lin(ks[4], ks[5], hidden, output_dim)
    return {"w1": w1, "b1": b1, "w2": w2, "b2": b2, "w3": w3, "b3": b3}


def reference_forward(x, p):
    h1 = jnp.maximum(x @ p["w1"] + p["b1"], 0.0)
    h2 = jnp.maximum(h1 @ p["w2"] + p["b2"], 0.0)
    return h2 @ p["w3"] + p["b3"]


if __name__ == "__main__":
    key = jax.random.PRNGKey(0)
    k_param, k_x1, k_x2 = jax.random.split(key, 3)

    batch, input_dim, output_dim = 8, 32, 8  # RAN state features -> scheduling actions
    params = init_params(k_param, input_dim, output_dim)
    packed = pack_params(params)

    # Small single-tile case (B=8 -> one tm=16 tile).
    x = jax.random.normal(k_x1, (batch, input_dim), jnp.float32)
    out = jax.block_until_ready(dqn_scheduler_forward(x, packed))
    ref = reference_forward(x, params)
    assert out.shape == (batch, output_dim)
    assert out.dtype == jnp.bfloat16
    # bf16 MXU operands + bf16 output -> relaxed tolerance vs f32 reference.
    assert jnp.allclose(out.astype(jnp.float32), ref, atol=5e-2, rtol=5e-2), \
        "mismatch vs reference (small)"

    # Larger case exercising padding-aware tiling (B=300 -> 304 padded rows, not 512).
    big_batch = 300
    xb = jax.random.normal(k_x2, (big_batch, input_dim), jnp.float32)
    outb = jax.block_until_ready(dqn_scheduler_forward(xb, packed))
    refb = reference_forward(xb, params)
    assert outb.shape == (big_batch, output_dim)
    assert jnp.allclose(outb.astype(jnp.float32), refb, atol=5e-2, rtol=5e-2), \
        "mismatch vs reference (grid)"

    print("KERNEL_OK")
</pallas_src>

<mosaic_0001>
module attributes {stable_mosaic.version = 11 : i64} {
  func.func @_dqn_kernel(%arg0: i32, %arg1: memref<16x32xf32, #tpu.memory_space<vmem>>, %arg2: memref<32x128xbf16, #tpu.memory_space<vmem>>, %arg3: memref<2x128x128xbf16, #tpu.memory_space<vmem>>, %arg4: memref<3x128xf32, #tpu.memory_space<vmem>>, %arg5: memref<16x128xbf16, #tpu.memory_space<vmem>>) attributes {dimension_semantics = [#tpu.dimension_semantics<parallel>], iteration_bounds = array<i64: 1>, scalar_prefetch = 0 : i64, scratch_operands = 0 : i64, tpu.core_type = #tpu.core_type<tc>, window_params = [{transform_indices = @transform_0, window_bounds = array<i64: 16, 32>}, {pipeline_mode = #tpu.pipeline_mode<synchronous>, transform_indices = @transform_1, window_bounds = array<i64: 32, 128>}, {pipeline_mode = #tpu.pipeline_mode<synchronous>, transform_indices = @transform_2, window_bounds = array<i64: 2, 128, 128>}, {pipeline_mode = #tpu.pipeline_mode<synchronous>, transform_indices = @transform_3, window_bounds = array<i64: 3, 128>}, {transform_indices = @transform_4, window_bounds = array<i64: 16, 128>}]} {
    %c0 = arith.constant 0 : index
    %c0_0 = arith.constant 0 : index
    %0 = vector.load %arg1[%c0, %c0_0] : memref<16x32xf32, #tpu.memory_space<vmem>>, vector<16x32xf32>
    %1 = arith.truncf %0 : vector<16x32xf32> to vector<16x32xbf16>
    %c0_1 = arith.constant 0 : index
    %c0_2 = arith.constant 0 : index
    %2 = vector.load %arg2[%c0_1, %c0_2] : memref<32x128xbf16, #tpu.memory_space<vmem>>, vector<32x128xbf16>
    %cst = arith.constant dense<0.000000e+00> : vector<16x128xf32>
    %3 = tpu.matmul %1, %2, %cst {dimension_numbers = #tpu.dot_dimension_numbers<[1], [0], [0], [1], [0, 0, 1, 1], [], []>} : vector<16x32xbf16>, vector<32x128xbf16>, vector<16x128xf32> -> vector<16x128xf32>
    %c0_3 = arith.constant 0 : index
    %c0_4 = arith.constant 0 : index
    %4 = vector.load %arg4[%c0_3, %c0_4] : memref<3x128xf32, #tpu.memory_space<vmem>>, vector<1x128xf32>
    %5 = vector.broadcast %4 : vector<1x128xf32> to vector<16x128xf32>
    %6 = arith.addf %3, %5 : vector<16x128xf32>
    %cst_5 = arith.constant 0.000000e+00 : f32
    %7 = vector.broadcast %cst_5 : f32 to vector<16x128xf32>
    %8 = arith.maximumf %6, %7 : vector<16x128xf32>
    %9 = arith.truncf %8 : vector<16x128xf32> to vector<16x128xbf16>
    %c0_6 = arith.constant 0 : index
    %c0_7 = arith.constant 0 : index
    %c0_8 = arith.constant 0 : index
    %10 = vector.load %arg3[%c0_6, %c0_7, %c0_8] : memref<2x128x128xbf16, #tpu.memory_space<vmem>>, vector<1x128x128xbf16>
    %11 = vector.shape_cast %10 : vector<1x128x128xbf16> to vector<128x128xbf16>
    %cst_9 = arith.constant dense<0.000000e+00> : vector<16x128xf32>
    %12 = tpu.matmul %9, %11, %cst_9 {dimension_numbers = #tpu.dot_dimension_numbers<[1], [0], [0], [1], [0, 0, 1, 1], [], []>} : vector<16x128xbf16>, vector<128x128xbf16>, vector<16x128xf32> -> vector<16x128xf32>
    %c1 = arith.constant 1 : index
    %c0_10 = arith.constant 0 : index
    %13 = vector.load %arg4[%c1, %c0_10] : memref<3x128xf32, #tpu.memory_space<vmem>>, vector<1x128xf32>
    %14 = vector.broadcast %13 : vector<1x128xf32> to vector<16x128xf32>
    %15 = arith.addf %12, %14 : vector<16x128xf32>
    %cst_11 = arith.constant 0.000000e+00 : f32
    %16 = vector.broadcast %cst_11 : f32 to vector<16x128xf32>
    %17 = arith.maximumf %15, %16 : vector<16x128xf32>
    %18 = arith.truncf %17 : vector<16x128xf32> to vector<16x128xbf16>
    %c1_12 = arith.constant 1 : index
    %c0_13 = arith.constant 0 : index
    %c0_14 = arith.constant 0 : index
    %19 = vector.load %arg3[%c1_12, %c0_13, %c0_14] : memref<2x128x128xbf16, #tpu.memory_space<vmem>>, vector<1x128x128xbf16>
    %20 = vector.shape_cast %19 : vector<1x128x128xbf16> to vector<128x128xbf16>
    %cst_15 = arith.constant dense<0.000000e+00> : vector<16x128xf32>
    %21 = tpu.matmul %18, %20, %cst_15 {dimension_numbers = #tpu.dot_dimension_numbers<[1], [0], [0], [1], [0, 0, 1, 1], [], []>} : vector<16x128xbf16>, vector<128x128xbf16>, vector<16x128xf32> -> vector<16x128xf32>
    %c2 = arith.constant 2 : index
    %c0_16 = arith.constant 0 : index
    %22 = vector.load %arg4[%c2, %c0_16] : memref<3x128xf32, #tpu.memory_space<vmem>>, vector<1x128xf32>
    %23 = vector.broadcast %22 : vector<1x128xf32> to vector<16x128xf32>
    %24 = arith.addf %21, %23 : vector<16x128xf32>
    %25 = arith.truncf %24 : vector<16x128xf32> to vector<16x128xbf16>
    %c0_17 = arith.constant 0 : index
    %c0_18 = arith.constant 0 : index
    %26 = vector.load %arg5[%c0_17, %c0_18] : memref<16x128xbf16, #tpu.memory_space<vmem>>, vector<16x128xbf16>
    tpu.vector_store %arg5[%c0_17, %c0_18], %25 {strides = array<i32>} : memref<16x128xbf16, #tpu.memory_space<vmem>>, vector<16x128xbf16>,
    return
  }
  func.func @transform_0(%arg0: i32) -> (i32, i32) {
    %c0_i32 = arith.constant 0 : i32
    %c0_i32_0 = arith.constant 0 : i32
    return %arg0, %c0_i32 : i32, i32
  }
  func.func @transform_1(%arg0: i32) -> (i32, i32) {
    %c0_i32 = arith.constant 0 : i32
    %c0_i32_0 = arith.constant 0 : i32
    %c0_i32_1 = arith.constant 0 : i32
    return %c0_i32, %c0_i32_0 : i32, i32
  }
  func.func @transform_2(%arg0: i32) -> (i32, i32, i32) {
    %c0_i32 = arith.constant 0 : i32
    %c0_i32_0 = arith.constant 0 : i32
    %c0_i32_1 = arith.constant 0 : i32
    %c0_i32_2 = arith.constant 0 : i32
    return %c0_i32, %c0_i32_0, %c0_i32_1 : i32, i32, i32
  }
  func.func @transform_3(%arg0: i32) -> (i32, i32) {
    %c0_i32 = arith.constant 0 : i32
    %c0_i32_0 = arith.constant 0 : i32
    %c0_i32_1 = arith.constant 0 : i32
    return %c0_i32, %c0_i32_0 : i32, i32
  }
  func.func @transform_4(%arg0: i32) -> (i32, i32) {
    %c0_i32 = arith.constant 0 : i32
    %c0_i32_0 = arith.constant 0 : i32
    return %arg0, %c0_i32 : i32, i32
  }
}

</mosaic_0001>

<llo_original>
// kernel: tpu_custom_call.1
$region0: #{tpu_custom_call.1}
  #allocation0 [shape = 'u32[]', space=smem, size = 0x4, offset = 0x4, fixed_abs, tag = 'smem constant byte address 0x4 - core index']
  #allocation1 [shape = 'u32[144,128]{1,0:T(1,128)}', space=vmem, size = 0x12000, scoped, tag = 'internal scratch']
  %s0 = inlined_call_operand.hbm [shape: f32[16,32], index: 0, kind: input, shape index: {}]
  %s1 = inlined_call_operand.hbm [shape: bf16[32,128], index: 1, kind: input, shape index: {}]
  %s2 = inlined_call_operand.hbm [shape: bf16[2,128,128], index: 2, kind: input, shape index: {}]
  %s3 = inlined_call_operand.vmem [shape: f32[3,128], index: 3, kind: input, shape index: {}]
  %s4 = inlined_call_operand.hbm [shape: bf16[16,128], index: 4, kind: output, shape index: {}]
  %s5 = sld [smem:[#allocation0]]
  $region38: #{tpu_custom_call.1} parent=0
    _
  %s7 = ssub.s32 1, %s5
  %s8 = scalar_select 0, %s7, %s5
  $region1: #{tpu_custom_call.1} parent=0
    #allocation2 [shape = 'u8[8192]{0}', space=vmem, size = 0x2000, scoped, tag = 'input window, operand 0, single buffered']
    #allocation3 [shape = 's32[1]{0}', space=sflag, size = 0x4, scoped, tag = 'scoped memory for tpu_custom_call.1']
    #allocation4 [shape = 's32[1]{0}', space=sflag, size = 0x4, scoped, tag = 'scoped memory for tpu_custom_call.1']
    #allocation5 [shape = 'u8[8192]{0}', space=vmem, size = 0x2000, scoped, tag = 'input window, operand 1, single buffered']
    #allocation6 [shape = 's32[1]{0}', space=sflag, size = 0x4, scoped, tag = 'scoped memory for tpu_custom_call.1']
    #allocation7 [shape = 'u8[65536]{0}', space=vmem, size = 0x10000, scoped, tag = 'input window, operand 2, single buffered']
    #allocation8 [shape = 'u8[4096]{0}', space=vmem, size = 0x1000, scoped, tag = 'output window, operand 0, single buffered']
    %9 = vsyncpa [#allocation3], 0
    %10 = vsyncpa [#allocation6], 0
    %11 = vsyncpa [#allocation4], 0
    // Predicated region
    $region2: #{tpu_custom_call.1} parent=1 // pred_check
      _
    $region3: #{tpu_custom_call.1} parent=1 // pred_check_branch
      %13 = sbr.rel (0) target = $region5
    $region4: #{tpu_custom_call.1} parent=1 // pred_region
      %s15 = ssub.s32 256, 256
      %16 = vsyncadd [#allocation3], %s15
      %s17 = sshll.u32 [#allocation2], 4
      %s18 = int_to_ptr.vmem [resolvable:$true] %s17
      %23 = dma.hbm_to_vmem [thread:$0]  %s0, 256, %s18, [#allocation3], 128, 128, 8
    $region5: #{tpu_custom_call.1} parent=1 // pred_fallthru
      _
    // Predicated region
    $region6: #{tpu_custom_call.1} parent=1 // pred_check
      _
    $region7: #{tpu_custom_call.1} parent=1 // pred_check_branch
      %25 = sbr.rel (0) target = $region9
    $region8: #{tpu_custom_call.1} parent=1 // pred_region
      %s27 = ssub.s32 256, 256
      %28 = vsyncadd [#allocation6], %s27
      %s29 = sshll.u32 [#allocation5], 4
      %s30 = int_to_ptr.vmem [resolvable:$true] %s29
      %35 = dma.hbm_to_vmem [thread:$0]  %s1, 256, %s30, [#allocation6], 64, 64, 4
    $region9: #{tpu_custom_call.1} parent=1 // pred_fallthru
      _
    // Predicated region
    $region10: #{tpu_custom_call.1} parent=1 // pred_check
      _
    $region11: #{tpu_custom_call.1} parent=1 // pred_check_branch
      %37 = sbr.rel (0) target = $region13
    $region12: #{tpu_custom_call.1} parent=1 // pred_region
      %s39 = ssub.s32 2048, 2048
      %40 = vsyncadd [#allocation6], %s39
      %s41 = sshll.u32 [#allocation7], 4
      %s42 = int_to_ptr.vmem [resolvable:$true] %s41
      %47 = dma.hbm_to_vmem [thread:$0]  %s2, 2048, %s42, [#allocation6], 64, 64, 4
    $region13: #{tpu_custom_call.1} parent=1 // pred_fallthru
      _
    // Predicated region
    $region14: #{tpu_custom_call.1} parent=1 // pred_check
      _
    $region15: #{tpu_custom_call.1} parent=1 // pred_check_branch
      %49 = sbr.rel (0) target = $region17
    $region16: #{tpu_custom_call.1} parent=1 // pred_region
      _
    $region17: #{tpu_custom_call.1} parent=1 // pred_fallthru
      _
    // Predicated region
    $region18: #{tpu_custom_call.1} parent=1 // pred_check
      _
    $region19: #{tpu_custom_call.1} parent=1 // pred_check_branch
      %51 = sbr.rel (0) target = $region21
    $region20: #{tpu_custom_call.1} parent=1 // pred_region
      %52 = dma.done [#allocation3], 256
    $region21: #{tpu_custom_call.1} parent=1 // pred_fallthru
      _
    // Predicated region
    $region22: #{tpu_custom_call.1} parent=1 // pred_check
      _
    $region23: #{tpu_custom_call.1} parent=1 // pred_check_branch
      %54 = sbr.rel (0) target = $region25
    $region24: #{tpu_custom_call.1} parent=1 // pred_region
      %55 = dma.done [#allocation6], 256
    $region25: #{tpu_custom_call.1} parent=1 // pred_fallthru
      _
    // Predicated region
    $region26: #{tpu_custom_call.1} parent=1 // pred_check
      _
    $region27: #{tpu_custom_call.1} parent=1 // pred_check_branch
      %57 = sbr.rel (0) target = $region29
    $region28: #{tpu_custom_call.1} parent=1 // pred_region
      %58 = dma.done [#allocation6], 2048
    $region29: #{tpu_custom_call.1} parent=1 // pred_fallthru
      _
    %v60 = vld [vmem:[#allocation2] sm:$0xff]
    %v61 = vld [vmem:[#allocation2 + $0x8] sm:$0xff]
    %v62 = vpack.c.bf16 %v61, %v60
    %v63 = vld [vmem:[#allocation5] sm:$0xf]
    %v64 = vld [vmem:[#allocation5 + $0x4] sm:$0xf]
    %v65 = vld [vmem:[#allocation5 + $0x8] sm:$0xf]
    %v66 = vld [vmem:[#allocation5 + $0xc] sm:$0xf]
    %v67 = vld [vmem:[%s3] sm:$0x1]
    %v68 = vlaneseq
    %v69 = vshrl.u32 %v68, 7
    %v70 = vsub.s32 0, %v69
    %v71 = vrot.slane %v67, %v70
    %v76 = vunpack.c.l.b16 %v63
    %v77 = vunpack.c.l.b16 %v64
    %v78 = vunpack.c.l.b16 %v65
    %v79 = vunpack.c.l.b16 %v66
    %v80 = vpack.c.b16 %v77, %v76
    %v81 = vpack.c.b16 %v79, %v78
    %vm84 = vcmask 261120
    %v86 = vsel %vm84, %v62, 0
    %88 = vmatprep.subr.bf16.mxu0 0
    %89 = vmatpush1.bf16.msra.mxu0 0
    %90 = vmatprep.subr.bf16.mxu0 0
    %91 = vmatpush1.bf16.msra.mxu0 0
    %92 = vmatprep.subr.bf16.mxu0 0
    %93 = vmatpush1.bf16.msra.mxu0 0
    %94 = vmatprep.subr.bf16.mxu0 0
    %95 = vmatpush1.bf16.msra.mxu0 0
    %96 = vmatprep.subr.bf16.mxu0 0
    %97 = vmatpush1.bf16.msra.mxu0 0
    %98 = vmatprep.subr.bf16.mxu0 0
    %99 = vmatpush1.bf16.msra.mxu0 0
    %100 = vmatprep.subr.bf16.mxu0 0
    %101 = vmatpush1.bf16.msra.mxu0 %v81
    %102 = vmatprep.subr.bf16.mxu0 0
    %103 = vmatpush1.bf16.msra.mxu0 %v80
    %104 = vmatprep.subr.bf16.mxu0 0
    %105 = vmatpush2.bf16.msra.mxu0 0
    %106 = vmatprep.subr.bf16.mxu0 0
    %107 = vmatpush2.bf16.msra.mxu0 0
    %108 = vmatprep.subr.bf16.mxu0 0
    %109 = vmatpush2.bf16.msra.mxu0 0
    %110 = vmatprep.subr.bf16.mxu0 0
    %111 = vmatpush2.bf16.msra.mxu0 0
    %112 = vmatprep.subr.bf16.mxu0 0
    %113 = vmatpush2.bf16.msra.mxu0 0
    %114 = vmatprep.subr.bf16.mxu0 0
    %115 = vmatpush2.bf16.msra.mxu0 0
    %116 = vmatprep.subr.bf16.mxu0 0
    %117 = vmatpush2.bf16.msra.mxu0 0
    %118 = vmatprep.subr.bf16.mxu0 0
    %119 = vmatpush2.bf16.msra.mxu0 0
    %120 = vmatprep.mubr.bf16.mxu0 0
    %121 = vmatmul.mubr.bf16.gmra.mxu0 %v86
    %v122 = vpop.f32.mrf.mxu0
    %v123 = vadd.f32 %v71, %v122
    %v124 = vpop.f32.mrf.mxu0
    %v125 = vpop.f32.mrf.mxu0
    %v126 = vadd.f32 %v71, %v125
    %v127 = vpop.f32.mrf.mxu0
    %128 = vdwg.mxu0
    %v129 = vmax.f32 %v123, 0.0
    %v130 = vmax.f32 %v126, 0.0
    %v131 = vpack.c.bf16 %v130, %v129
    %v132 = vld [vmem:[#allocation7] sm:$0xf]
    %v133 = vld [vmem:[#allocation7 + $0x4] sm:$0xf]
    %v134 = vld [vmem:[#allocation7 + $0x8] sm:$0xf]
    %v135 = vld [vmem:[#allocation7 + $0xc] sm:$0xf]
    %v136 = vld [vmem:[#allocation7 + $0x10] sm:$0xf]
    %v137 = vld [vmem:[#allocation7 + $0x14] sm:$0xf]
    %v138 = vld [vmem:[#allocation7 + $0x18] sm:$0xf]
    %v139 = vld [vmem:[#allocation7 + $0x1c] sm:$0xf]
    %v140 = vld [vmem:[#allocation7 + $0x20] sm:$0xf]
    %v141 = vld [vmem:[#allocation7 + $0x24] sm:$0xf]
    %v142 = vld [vmem:[#allocation7 + $0x28] sm:$0xf]
    %v143 = vld [vmem:[#allocation7 + $0x2c] sm:$0xf]
    %v144 = vld [vmem:[#allocation7 + $0x30] sm:$0xf]
    %v145 = vld [vmem:[#allocation7 + $0x34] sm:$0xf]
    %v146 = vld [vmem:[#allocation7 + $0x38] sm:$0xf]
    %v147 = vld [vmem:[#allocation7 + $0x3c] sm:$0xf]
    %v148 = vld [vmem:[%s3 + $0x1] sm:$0x1]
    %v149 = vlaneseq
    %v150 = vshrl.u32 %v149, 7
    %v151 = vsub.s32 0, %v150
    %v152 = vrot.slane %v148, %v151
    %v169 = vunpack.c.l.b16 %v132
    %v170 = vunpack.c.l.b16 %v133
    %v171 = vunpack.c.l.b16 %v134
    %v172 = vunpack.c.l.b16 %v135
    %v173 = vunpack.c.l.b16 %v136
    %v174 = vunpack.c.l.b16 %v137
    %v175 = vunpack.c.l.b16 %v138
    %v176 = vunpack.c.l.b16 %v139
    %v177 = vunpack.c.l.b16 %v140
    %v178 = vunpack.c.l.b16 %v141
    %v179 = vunpack.c.l.b16 %v142
    %v180 = vunpack.c.l.b16 %v143
    %v181 = vunpack.c.l.b16 %v144
    %v182 = vunpack.c.l.b16 %v145
    %v183 = vunpack.c.l.b16 %v146
    %v184 = vunpack.c.l.b16 %v147
    %v185 = vpack.c.b16 %v170, %v169
    %v186 = vpack.c.b16 %v172, %v171
    %v187 = vpack.c.b16 %v174, %v173
    %v188 = vpack.c.b16 %v176, %v175
    %v189 = vpack.c.b16 %v178, %v177
    %v190 = vpack.c.b16 %v180, %v179
    %v191 = vpack.c.b16 %v182, %v181
    %v192 = vpack.c.b16 %v184, %v183
    %201 = vmatprep.subr.bf16.mxu0 0
    %202 = vmatpush1.bf16.msra.mxu0 %v192
    %203 = vmatprep.subr.bf16.mxu0 0
    %204 = vmatpush1.bf16.msra.mxu0 %v191
    %205 = vmatprep.subr.bf16.mxu0 0
    %206 = vmatpush1.bf16.msra.mxu0 %v190
    %207 = vmatprep.subr.bf16.mxu0 0
    %208 = vmatpush1.bf16.msra.mxu0 %v189
    %209 = vmatprep.subr.bf16.mxu0 0
    %210 = vmatpush1.bf16.msra.mxu0 %v188
    %211 = vmatprep.subr.bf16.mxu0 0
    %212 = vmatpush1.bf16.msra.mxu0 %v187
    %213 = vmatprep.subr.bf16.mxu0 0
    %214 = vmatpush1.bf16.msra.mxu0 %v186
    %215 = vmatprep.subr.bf16.mxu0 0
    %216 = vmatpush1.bf16.msra.mxu0 %v185
    %217 = vmatprep.subr.bf16.mxu0 0
    %218 = vmatpush2.bf16.msra.mxu0 0
    %219 = vmatprep.subr.bf16.mxu0 0
    %220 = vmatpush2.bf16.msra.mxu0 0
    %221 = vmatprep.subr.bf16.mxu0 0
    %222 = vmatpush2.bf16.msra.mxu0 0
    %223 = vmatprep.subr.bf16.mxu0 0
    %224 = vmatpush2.bf16.msra.mxu0 0
    %225 = vmatprep.subr.bf16.mxu0 0
    %226 = vmatpush2.bf16.msra.mxu0 0
    %227 = vmatprep.subr.bf16.mxu0 0
    %228 = vmatpush2.bf16.msra.mxu0 0
    %229 = vmatprep.subr.bf16.mxu0 0
    %230 = vmatpush2.bf16.msra.mxu0 0
    %231 = vmatprep.subr.bf16.mxu0 0
    %232 = vmatpush2.bf16.msra.mxu0 0
    %233 = vmatprep.mubr.bf16.mxu0 0
    %234 = vmatmul.mubr.bf16.gmra.mxu0 %v131
    %v235 = vpop.f32.mrf.mxu0
    %v236 = vadd.f32 %v152, %v235
    %v237 = vpop.f32.mrf.mxu0
    %v238 = vpop.f32.mrf.mxu0
    %v239 = vadd.f32 %v152, %v238
    %v240 = vpop.f32.mrf.mxu0
    %241 = vdwg.mxu0
    %v242 = vmax.f32 %v236, 0.0
    %v243 = vmax.f32 %v239, 0.0
    %v244 = vpack.c.bf16 %v243, %v242
    %s245 = scalar_lea.vmem [#allocation7], 64
    %v246 = vld [vmem:[%s245] sm:$0xf]
    %v247 = vld [vmem:[%s245 + $0x4] sm:$0xf]
    %v248 = vld [vmem:[%s245 + $0x8] sm:$0xf]
    %v249 = vld [vmem:[%s245 + $0xc] sm:$0xf]
    %v250 = vld [vmem:[%s245 + $0x10] sm:$0xf]
    %v251 = vld [vmem:[%s245 + $0x14] sm:$0xf]
    %v252 = vld [vmem:[%s245 + $0x18] sm:$0xf]
    %v253 = vld [vmem:[%s245 + $0x1c] sm:$0xf]
    %v254 = vld [vmem:[%s245 + $0x20] sm:$0xf]
    %v255 = vld [vmem:[%s245 + $0x24] sm:$0xf]
    %v256 = vld [vmem:[%s245 + $0x28] sm:$0xf]
    %v257 = vld [vmem:[%s245 + $0x2c] sm:$0xf]
    %v258 = vld [vmem:[%s245 + $0x30] sm:$0xf]
    %v259 = vld [vmem:[%s245 + $0x34] sm:$0xf]
    %v260 = vld [vmem:[%s245 + $0x38] sm:$0xf]
    %v261 = vld [vmem:[%s245 + $0x3c] sm:$0xf]
    %v262 = vld [vmem:[%s3 + $0x2] sm:$0x1]
    %v263 = vlaneseq
    %v264 = vshrl.u32 %v263, 7
    %v265 = vsub.s32 0, %v264
    %v266 = vrot.slane %v262, %v265
    %v283 = vunpack.c.l.b16 %v246
    %v284 = vunpack.c.l.b16 %v247
    %v285 = vunpack.c.l.b16 %v248
    %v286 = vunpack.c.l.b16 %v249
    %v287 = vunpack.c.l.b16 %v250
    %v288 = vunpack.c.l.b16 %v251
    %v289 = vunpack.c.l.b16 %v252
    %v290 = vunpack.c.l.b16 %v253
    %v291 = vunpack.c.l.b16 %v254
    %v292 = vunpack.c.l.b16 %v255
    %v293 = vunpack.c.l.b16 %v256
    %v294 = vunpack.c.l.b16 %v257
    %v295 = vunpack.c.l.b16 %v258
    %v296 = vunpack.c.l.b16 %v259
    %v297 = vunpack.c.l.b16 %v260
    %v298 = vunpack.c.l.b16 %v261
    %v299 = vpack.c.b16 %v284, %v283
    %v300 = vpack.c.b16 %v286, %v285
    %v301 = vpack.c.b16 %v288, %v287
    %v302 = vpack.c.b16 %v290, %v289
    %v303 = vpack.c.b16 %v292, %v291
    %v304 = vpack.c.b16 %v294, %v293
    %v305 = vpack.c.b16 %v296, %v295
    %v306 = vpack.c.b16 %v298, %v297
    %315 = vmatprep.subr.bf16.mxu0 0
    %316 = vmatpush1.bf16.msra.mxu0 %v306
    %317 = vmatprep.subr.bf16.mxu0 0
    %318 = vmatpush1.bf16.msra.mxu0 %v305
    %319 = vmatprep.subr.bf16.mxu0 0
    %320 = vmatpush1.bf16.msra.mxu0 %v304
    %321 = vmatprep.subr.bf16.mxu0 0
    %322 = vmatpush1.bf16.msra.mxu0 %v303
    %323 = vmatprep.subr.bf16.mxu0 0
    %324 = vmatpush1.bf16.msra.mxu0 %v302
    %325 = vmatprep.subr.bf16.mxu0 0
    %326 = vmatpush1.bf16.msra.mxu0 %v301
    %327 = vmatprep.subr.bf16.mxu0 0
    %328 = vmatpush1.bf16.msra.mxu0 %v300
    %329 = vmatprep.subr.bf16.mxu0 0
    %330 = vmatpush1.bf16.msra.mxu0 %v299
    %331 = vmatprep.subr.bf16.mxu0 0
    %332 = vmatpush2.bf16.msra.mxu0 0
    %333 = vmatprep.subr.bf16.mxu0 0
    %334 = vmatpush2.bf16.msra.mxu0 0
    %335 = vmatprep.subr.bf16.mxu0 0
    %336 = vmatpush2.bf16.msra.mxu0 0
    %337 = vmatprep.subr.bf16.mxu0 0
    %338 = vmatpush2.bf16.msra.mxu0 0
    %339 = vmatprep.subr.bf16.mxu0 0
    %340 = vmatpush2.bf16.msra.mxu0 0
    %341 = vmatprep.subr.bf16.mxu0 0
    %342 = vmatpush2.bf16.msra.mxu0 0
    %343 = vmatprep.subr.bf16.mxu0 0
    %344 = vmatpush2.bf16.msra.mxu0 0
    %345 = vmatprep.subr.bf16.mxu0 0
    %346 = vmatpush2.bf16.msra.mxu0 0
    %347 = vmatprep.mubr.bf16.mxu0 0
    %348 = vmatmul.mubr.bf16.gmra.mxu0 %v244
    %v349 = vpop.f32.mrf.mxu0
    %v350 = vadd.f32 %v266, %v349
    %v351 = vpop.f32.mrf.mxu0
    %v352 = vpop.f32.mrf.mxu0
    %v353 = vadd.f32 %v266, %v352
    %v354 = vpop.f32.mrf.mxu0
    %355 = vdwg.mxu0
    %v356 = vpack.c.bf16 %v353, %v350
    %v358 = vunpack.c.l.b16 %v356
    %v359 = vunpack.c.h.b16 %v356
    %v360 = vpack.c.b16 %v358, %v358
    %v361 = vpack.c.b16 %v359, %v359
    %364 = vst [vmem:[#allocation8] sm:$0xf] %v360
    %365 = vst [vmem:[#allocation8 + $0x4] sm:$0xf] %v361
    // Predicated region
    $region30: #{tpu_custom_call.1} parent=1 // pred_check
      _
    $region31: #{tpu_custom_call.1} parent=1 // pred_check_branch
      %367 = sbr.rel (0) target = $region33
    $region32: #{tpu_custom_call.1} parent=1 // pred_region
      %s369 = ssub.s32 128, 128
      %370 = vsyncadd [#allocation4], %s369
      %s371 = sshll.u32 [#allocation8], 4
      %s372 = int_to_ptr.vmem [resolvable:$true] %s371
      %377 = dma.vmem_to_hbm [thread:$0]  %s372, 128, %s4, [#allocation4], 64, 64, 4
    $region33: #{tpu_custom_call.1} parent=1 // pred_fallthru
      _
    // Predicated region
    $region34: #{tpu_custom_call.1} parent=1 // pred_check
      _
    $region35: #{tpu_custom_call.1} parent=1 // pred_check_branch
      %379 = sbr.rel (0) target = $region37
    $region36: #{tpu_custom_call.1} parent=1 // pred_region
      %380 = dma.done [#allocation4], 128
    $region37: #{tpu_custom_call.1} parent=1 // pred_fallthru
      _
    %381 = vsyncpa [#allocation3], 1
    %382 = vsyncpa [#allocation6], 1
    %383 = vsyncpa [#allocation4], 1

</llo_original>
